<compile_context>
chip_gen: v5e
topology: v5e:2x2
jax: 0.10.0
libtpu: 0.0.40
codegen_flags: <defaults>
</compile_context>

<pallas_src>
import functools

import jax
import jax.numpy as jnp
from jax.experimental import pallas as pl
from jax.experimental.pallas import tpu as pltpu


def _dws_kernel(x_ref, wdw_ref, dwb_ref, wpw_ref, pwb_ref, o_ref,
                xp_ref, dw_ref, *, K, pad_left):
    """One batch block: depthwise conv -> +shift/ReLU -> pointwise conv -> +shift/ReLU."""
    B_blk, C, L = x_ref.shape
    Lp = L + K - 1
    pad_right = (K - 1) - pad_left

    # Stage the 'same'-padded input for the whole batch block in VMEM
    # (x is read from HBM exactly once; halo zeroing is (K-1) lanes wide).
    if pad_left:
        xp_ref[:, :, 0:pad_left] = jnp.zeros((B_blk, C, pad_left), xp_ref.dtype)
    if pad_right:
        xp_ref[:, :, pad_left + L:Lp] = jnp.zeros((B_blk, C, pad_right), xp_ref.dtype)
    xp_ref[:, :, pad_left:pad_left + L] = x_ref[...].astype(xp_ref.dtype)

    wdw = wdw_ref[...].astype(jnp.float32)      # (C, K)  depthwise W, BN scale folded
    dwb = dwb_ref[...]                          # (C, 1)  depthwise shift (bias + BN)
    xp = xp_ref[...]                            # (B_blk, C, Lp) f32

    # Depthwise 'same' conv (stride 1): one whole-block VPU op per tap,
    # batch-vectorised (no per-batch loop).  f32 VPU math (safe on v5e too).
    acc = xp[:, :, 0:L] * wdw[:, 0:1][None]
    for k in range(1, K):
        acc = acc + xp[:, :, k:k + L] * wdw[:, k:k + 1][None]
    dw = jnp.maximum(acc + dwb[None], 0.0)

    # Feed the MXU in its native dtype (bf16 by default, f32 for validation).
    dw_ref[...] = dw.astype(dw_ref.dtype)       # (B_blk, C, L) activation slab

    wpw = wpw_ref[...].astype(dw_ref.dtype)     # (O, C)  pointwise W, BN scale folded
    pwb = pwb_ref[...]                          # (O, 1)  pointwise shift (bias + BN)

    # Pointwise conv = channel-mixing MXU matmul per batch element.  dw_ref[b]
    # is already in the natural MXU rhs layout (C sublanes, L lanes) so no
    # relayout is needed, and each o_ref[b] store is a whole unmasked (O, L)
    # tile (lane-dense when L % 128 == 0).
    for b in range(B_blk):
        pw = jnp.dot(wpw, dw_ref[b], preferred_element_type=jnp.float32)   # (O, L)
        o_ref[b] = jnp.maximum(pw + pwb, 0.0).astype(o_ref.dtype)


def fold_bn_params(params, eps=1e-5):
    """Fold conv bias + eval-mode BatchNorm into the conv weights / a per-channel shift."""
    dw_scale = params["gamma1"] / jnp.sqrt(params["var1"] + eps)
    pw_scale = params["gamma2"] / jnp.sqrt(params["var2"] + eps)
    return {
        "w_dw": params["w_dw"] * dw_scale[:, None],
        "dw_shift": ((params["b_dw"] - params["mean1"]) * dw_scale
                     + params["beta1"])[:, None],
        "w_pw": params["w_pw"] * pw_scale[:, None],
        "pw_shift": ((params["b_pw"] - params["mean2"]) * pw_scale
                     + params["beta2"])[:, None],
    }


def _vmem_capacity_bytes(default=64 << 20):
    """Best-effort VMEM capacity query; conservative (v7x-sized) fallback."""
    try:
        info = pltpu.get_tpu_info()
        for attr in ("vmem_capacity_bytes", "vmem_size_bytes", "vmem_bytes"):
            cap = getattr(info, attr, None)
            if cap:
                return int(cap)
    except Exception:
        pass
    return default


def _pick_batch_block(N, C, O, L, K, *, x_itemsize, out_itemsize, mxu_itemsize,
                      budget_bytes, max_b=16):
    """Largest divisor of N whose per-step VMEM footprint fits the budget.

    Capped at N//2 so the grid has >=2 steps and both v7x TensorCores get work.
    """
    Lp = L + K - 1
    per_b = (2 * C * L * x_itemsize          # double-buffered x block
             + 2 * O * L * out_itemsize      # double-buffered out block
             + 4 * C * Lp                    # f32 padded staging scratch
             + C * L * mxu_itemsize          # activation slab scratch
             + 2 * 4 * C * L)                # f32 tap/acc temporaries headroom
    cap = max(1, budget_bytes // max(per_b, 1))
    hard_cap = min(N, max_b, cap, max(1, N // 2))
    best = 1
    for b in range(1, hard_cap + 1):
        if N % b == 0:
            best = b
    return best


def dws_conv_block(x, params, *, kernel_size, eps=1e-5, batch_block=None,
                   mxu_dtype=jnp.bfloat16, vmem_limit_bytes=None,
                   block_budget_bytes=None):
    """x: (N, C, L).  Returns (N, O, L) in x.dtype."""
    N, C, L = x.shape
    K = kernel_size
    O = params["w_pw"].shape[0]
    # PyTorch padding='same' (stride=1): left = (K-1)//2, right = (K-1) - left.
    pad_left = (K - 1) // 2
    Lp = L + K - 1

    folded = fold_bn_params(params, eps)

    # Generation-aware VMEM sizing: 48 MiB on v7x (64 MiB VMEM), up to 96 MiB
    # on v5e/v6e (128 MiB VMEM); always set explicitly (v5e default scope is 16 MiB).
    cap = _vmem_capacity_bytes()
    if vmem_limit_bytes is None:
        vmem_limit_bytes = max(32 << 20, min(cap * 3 // 4, 96 << 20))
    if block_budget_bytes is None:
        block_budget_bytes = vmem_limit_bytes // 3

    if batch_block is None:
        batch_block = _pick_batch_block(
            N, C, O, L, K,
            x_itemsize=jnp.dtype(x.dtype).itemsize,
            out_itemsize=jnp.dtype(x.dtype).itemsize,
            mxu_itemsize=jnp.dtype(mxu_dtype).itemsize,
            budget_bytes=block_budget_bytes)
    B_blk = batch_block
    assert N % B_blk == 0, "batch_block must divide the batch size"

    kernel = functools.partial(_dws_kernel, K=K, pad_left=pad_left)

    return pl.pallas_call(
        kernel,
        out_shape=jax.ShapeDtypeStruct((N, O, L), x.dtype),
        grid_spec=pltpu.PrefetchScalarGridSpec(
            num_scalar_prefetch=0,
            grid=(N // B_blk,),
            in_specs=[
                pl.BlockSpec((B_blk, C, L), lambda n: (n, 0, 0)),   # x (read once)
                pl.BlockSpec((C, K), lambda n: (0, 0)),             # depthwise W (BN folded)
                pl.BlockSpec((C, 1), lambda n: (0, 0)),             # depthwise shift
                pl.BlockSpec((O, C), lambda n: (0, 0)),             # pointwise W (BN folded)
                pl.BlockSpec((O, 1), lambda n: (0, 0)),             # pointwise shift
            ],
            out_specs=pl.BlockSpec((B_blk, O, L), lambda n: (n, 0, 0)),
            scratch_shapes=[
                pltpu.VMEM((B_blk, C, Lp), jnp.float32),            # padded-input staging
                pltpu.VMEM((B_blk, C, L), mxu_dtype),               # depthwise activation slab
            ],
        ),
        compiler_params=pltpu.CompilerParams(
            dimension_semantics=("parallel",),
            vmem_limit_bytes=int(vmem_limit_bytes),
        ),
    )(x, folded["w_dw"], folded["dw_shift"], folded["w_pw"], folded["pw_shift"])


def make_params(key, in_channels, out_channels, kernel_size):
    """Deterministic synthetic conv weights/biases + BatchNorm (eval) statistics."""
    C, O, K = in_channels, out_channels, kernel_size
    ks = jax.random.split(key, 8)
    return {
        "w_dw": jax.random.normal(ks[0], (C, K), jnp.float32) * 0.5,   # (C,1,K) squeezed
        "b_dw": jax.random.normal(ks[1], (C,), jnp.float32) * 0.1,
        "w_pw": jax.random.normal(ks[2], (O, C), jnp.float32) * 0.5,   # (O,C,1) squeezed
        "b_pw": jax.random.normal(ks[3], (O,), jnp.float32) * 0.1,
        "gamma1": 1.0 + 0.1 * jax.random.normal(ks[4], (C,), jnp.float32),
        "beta1": 0.1 * jax.random.normal(ks[5], (C,), jnp.float32),
        "mean1": 0.05 * jnp.arange(C, dtype=jnp.float32),
        "var1": 1.0 + 0.02 * jnp.arange(C, dtype=jnp.float32),
        "gamma2": 1.0 + 0.1 * jax.random.normal(ks[6], (O,), jnp.float32),
        "beta2": 0.1 * jax.random.normal(ks[7], (O,), jnp.float32),
        "mean2": 0.03 * jnp.arange(O, dtype=jnp.float32),
        "var2": 1.0 + 0.01 * jnp.arange(O, dtype=jnp.float32),
    }


def ref_forward(x, p, kernel_size, eps=1e-5):
    """Pure-JAX reference mirroring the PyTorch forward (eval-mode BN, unfolded)."""
    N, C, L = x.shape
    K = kernel_size
    pad_left = (K - 1) // 2
    xpad = jnp.pad(x, ((0, 0), (0, 0), (pad_left, (K - 1) - pad_left)))
    dw = jnp.zeros((N, C, L), jnp.float32)
    for k in range(K):
        dw = dw + xpad[:, :, k:k + L] * p["w_dw"][None, :, k, None]
    dw = dw + p["b_dw"][None, :, None]
    dw = (dw - p["mean1"][None, :, None]) / jnp.sqrt(p["var1"][None, :, None] + eps)
    dw = dw * p["gamma1"][None, :, None] + p["beta1"][None, :, None]
    dw = jnp.maximum(dw, 0.0)
    pw = jnp.einsum("oc,ncl->nol", p["w_pw"], dw,
                    precision=jax.lax.Precision.HIGHEST)
    pw = pw + p["b_pw"][None, :, None]
    pw = (pw - p["mean2"][None, :, None]) / jnp.sqrt(p["var2"][None, :, None] + eps)
    pw = pw * p["gamma2"][None, :, None] + p["beta2"][None, :, None]
    return jnp.maximum(pw, 0.0)


if __name__ == "__main__":
    N, C, O, L, K = 2, 4, 8, 16, 3   # batch, in_ch, out_ch, seq_len, kernel_size
    key = jax.random.PRNGKey(0)
    kx, kp = jax.random.split(key)
    x = jax.random.normal(kx, (N, C, L), jnp.float32)
    params = make_params(kp, C, O, K)
    ref = ref_forward(x, params, K)

    # f32-MXU validation path: tight tolerance against the pure-JAX reference.
    out_f32 = jax.block_until_ready(
        dws_conv_block(x, params, kernel_size=K, mxu_dtype=jnp.float32))
    assert out_f32.shape == (N, O, L)
    assert jnp.allclose(out_f32, ref, atol=1e-5, rtol=1e-5), \
        float(jnp.max(jnp.abs(out_f32 - ref)))

    # Default perf configuration (bf16 MXU inputs, f32 accumulation): relaxed tolerance.
    out_bf = jax.block_until_ready(dws_conv_block(x, params, kernel_size=K))
    assert out_bf.shape == (N, O, L)
    assert jnp.allclose(out_bf, ref, atol=1e-1, rtol=1e-1), \
        float(jnp.max(jnp.abs(out_bf - ref)))

    print("KERNEL_OK")
</pallas_src>

<mosaic_0001>
module attributes {stable_mosaic.version = 11 : i64} {
  func.func @_dws_kernel(%arg0: i32, %arg1: memref<1x4x16xf32, #tpu.memory_space<vmem>>, %arg2: memref<4x3xf32, #tpu.memory_space<vmem>>, %arg3: memref<4x1xf32, #tpu.memory_space<vmem>>, %arg4: memref<8x4xf32, #tpu.memory_space<vmem>>, %arg5: memref<8x1xf32, #tpu.memory_space<vmem>>, %arg6: memref<1x8x16xf32, #tpu.memory_space<vmem>>, %arg7: memref<1x4x18xf32, #tpu.memory_space<vmem>>, %arg8: memref<1x4x16xf32, #tpu.memory_space<vmem>>) attributes {dimension_semantics = [#tpu.dimension_semantics<parallel>], iteration_bounds = array<i64: 2>, scalar_prefetch = 0 : i64, scratch_operands = 2 : i64, tpu.core_type = #tpu.core_type<tc>, window_params = [{transform_indices = @transform_0, window_bounds = array<i64: 1, 4, 16>}, {pipeline_mode = #tpu.pipeline_mode<synchronous>, transform_indices = @transform_1, window_bounds = array<i64: 4, 3>}, {pipeline_mode = #tpu.pipeline_mode<synchronous>, transform_indices = @transform_2, window_bounds = array<i64: 4, 1>}, {pipeline_mode = #tpu.pipeline_mode<synchronous>, transform_indices = @transform_3, window_bounds = array<i64: 8, 4>}, {pipeline_mode = #tpu.pipeline_mode<synchronous>, transform_indices = @transform_4, window_bounds = array<i64: 8, 1>}, {transform_indices = @transform_5, window_bounds = array<i64: 1, 8, 16>}]} {
    %cst = arith.constant 0.000000e+00 : f32
    %0 = vector.broadcast %cst : f32 to vector<1x4x1xf32>
    %c0 = arith.constant 0 : index
    %c0_0 = arith.constant 0 : index
    %c0_1 = arith.constant 0 : index
    %1 = vector.load %arg7[%c0, %c0_0, %c0_1] : memref<1x4x18xf32, #tpu.memory_space<vmem>>, vector<1x4x1xf32>
    tpu.vector_store %arg7[%c0, %c0_0, %c0_1], %0 {strides = array<i32>} : memref<1x4x18xf32, #tpu.memory_space<vmem>>, vector<1x4x1xf32>,
    %cst_2 = arith.constant 0.000000e+00 : f32
    %2 = vector.broadcast %cst_2 : f32 to vector<1x4x1xf32>
    %c0_3 = arith.constant 0 : index
    %c0_4 = arith.constant 0 : index
    %c17 = arith.constant 17 : index
    %3 = vector.load %arg7[%c0_3, %c0_4, %c17] : memref<1x4x18xf32, #tpu.memory_space<vmem>>, vector<1x4x1xf32>
    tpu.vector_store %arg7[%c0_3, %c0_4, %c17], %2 {strides = array<i32>} : memref<1x4x18xf32, #tpu.memory_space<vmem>>, vector<1x4x1xf32>,
    %c0_5 = arith.constant 0 : index
    %c0_6 = arith.constant 0 : index
    %c0_7 = arith.constant 0 : index
    %4 = vector.load %arg1[%c0_5, %c0_6, %c0_7] : memref<1x4x16xf32, #tpu.memory_space<vmem>>, vector<1x4x16xf32>
    %c0_8 = arith.constant 0 : index
    %c0_9 = arith.constant 0 : index
    %c1 = arith.constant 1 : index
    %5 = vector.load %arg7[%c0_8, %c0_9, %c1] : memref<1x4x18xf32, #tpu.memory_space<vmem>>, vector<1x4x16xf32>
    tpu.vector_store %arg7[%c0_8, %c0_9, %c1], %4 {strides = array<i32>} : memref<1x4x18xf32, #tpu.memory_space<vmem>>, vector<1x4x16xf32>,
    %c0_10 = arith.constant 0 : index
    %c0_11 = arith.constant 0 : index
    %6 = vector.load %arg2[%c0_10, %c0_11] : memref<4x3xf32, #tpu.memory_space<vmem>>, vector<4x3xf32>
    %c0_12 = arith.constant 0 : index
    %c0_13 = arith.constant 0 : index
    %7 = vector.load %arg3[%c0_12, %c0_13] : memref<4x1xf32, #tpu.memory_space<vmem>>, vector<4x1xf32>
    %c0_14 = arith.constant 0 : index
    %c0_15 = arith.constant 0 : index
    %c0_16 = arith.constant 0 : index
    %8 = vector.load %arg7[%c0_14, %c0_15, %c0_16] : memref<1x4x18xf32, #tpu.memory_space<vmem>>, vector<1x4x18xf32>
    %9 = vector.extract_strided_slice %8 {offsets = [0, 0, 0], sizes = [1, 4, 16], strides = [1, 1, 1]} : vector<1x4x18xf32> to vector<1x4x16xf32>
    %10 = vector.extract_strided_slice %6 {offsets = [0, 0], sizes = [4, 1], strides = [1, 1]} : vector<4x3xf32> to vector<4x1xf32>
    %11 = vector.shape_cast %10 : vector<4x1xf32> to vector<1x4x1xf32>
    %12 = vector.broadcast %11 : vector<1x4x1xf32> to vector<1x4x16xf32>
    %13 = arith.mulf %9, %12 : vector<1x4x16xf32>
    %14 = vector.extract_strided_slice %8 {offsets = [0, 0, 1], sizes = [1, 4, 16], strides = [1, 1, 1]} : vector<1x4x18xf32> to vector<1x4x16xf32>
    %15 = vector.extract_strided_slice %6 {offsets = [0, 1], sizes = [4, 1], strides = [1, 1]} : vector<4x3xf32> to vector<4x1xf32>
    %16 = vector.shape_cast %15 : vector<4x1xf32> to vector<1x4x1xf32>
    %17 = vector.broadcast %16 : vector<1x4x1xf32> to vector<1x4x16xf32>
    %18 = arith.mulf %14, %17 : vector<1x4x16xf32>
    %19 = arith.addf %13, %18 : vector<1x4x16xf32>
    %20 = vector.extract_strided_slice %8 {offsets = [0, 0, 2], sizes = [1, 4, 16], strides = [1, 1, 1]} : vector<1x4x18xf32> to vector<1x4x16xf32>
    %21 = vector.extract_strided_slice %6 {offsets = [0, 2], sizes = [4, 1], strides = [1, 1]} : vector<4x3xf32> to vector<4x1xf32>
    %22 = vector.shape_cast %21 : vector<4x1xf32> to vector<1x4x1xf32>
    %23 = vector.broadcast %22 : vector<1x4x1xf32> to vector<1x4x16xf32>
    %24 = arith.mulf %20, %23 : vector<1x4x16xf32>
    %25 = arith.addf %19, %24 : vector<1x4x16xf32>
    %26 = vector.shape_cast %7 : vector<4x1xf32> to vector<1x4x1xf32>
    %27 = vector.broadcast %26 : vector<1x4x1xf32> to vector<1x4x16xf32>
    %28 = arith.addf %25, %27 : vector<1x4x16xf32>
    %cst_17 = arith.constant 0.000000e+00 : f32
    %29 = vector.broadcast %cst_17 : f32 to vector<1x4x16xf32>
    %30 = arith.maximumf %28, %29 : vector<1x4x16xf32>
    %c0_18 = arith.constant 0 : index
    %c0_19 = arith.constant 0 : index
    %c0_20 = arith.constant 0 : index
    %31 = vector.load %arg8[%c0_18, %c0_19, %c0_20] : memref<1x4x16xf32, #tpu.memory_space<vmem>>, vector<1x4x16xf32>
    tpu.vector_store %arg8[%c0_18, %c0_19, %c0_20], %30 {strides = array<i32>} : memref<1x4x16xf32, #tpu.memory_space<vmem>>, vector<1x4x16xf32>,
    %c0_21 = arith.constant 0 : index
    %c0_22 = arith.constant 0 : index
    %32 = vector.load %arg4[%c0_21, %c0_22] : memref<8x4xf32, #tpu.memory_space<vmem>>, vector<8x4xf32>
    %c0_23 = arith.constant 0 : index
    %c0_24 = arith.constant 0 : index
    %33 = vector.load %arg5[%c0_23, %c0_24] : memref<8x1xf32, #tpu.memory_space<vmem>>, vector<8x1xf32>
    %c0_25 = arith.constant 0 : index
    %c0_26 = arith.constant 0 : index
    %c0_27 = arith.constant 0 : index
    %34 = vector.load %arg8[%c0_25, %c0_26, %c0_27] : memref<1x4x16xf32, #tpu.memory_space<vmem>>, vector<1x4x16xf32>
    %35 = vector.shape_cast %34 : vector<1x4x16xf32> to vector<4x16xf32>
    %cst_28 = arith.constant dense<0.000000e+00> : vector<8x16xf32>
    %36 = tpu.matmul %32, %35, %cst_28 {dimension_numbers = #tpu.dot_dimension_numbers<[1], [0], [0], [1], [0, 0, 1, 1], [], []>} : vector<8x4xf32>, vector<4x16xf32>, vector<8x16xf32> -> vector<8x16xf32>
    %37 = vector.broadcast %33 : vector<8x1xf32> to vector<8x16xf32>
    %38 = arith.addf %36, %37 : vector<8x16xf32>
    %cst_29 = arith.constant 0.000000e+00 : f32
    %39 = vector.broadcast %cst_29 : f32 to vector<8x16xf32>
    %40 = arith.maximumf %38, %39 : vector<8x16xf32>
    %c0_30 = arith.constant 0 : index
    %c0_31 = arith.constant 0 : index
    %c0_32 = arith.constant 0 : index
    %41 = vector.load %arg6[%c0_30, %c0_31, %c0_32] : memref<1x8x16xf32, #tpu.memory_space<vmem>>, vector<1x8x16xf32>
    %42 = vector.shape_cast %41 : vector<1x8x16xf32> to vector<8x16xf32>
    %43 = vector.shape_cast %40 : vector<8x16xf32> to vector<1x8x16xf32>
    tpu.vector_store %arg6[%c0_30, %c0_31, %c0_32], %43 {strides = array<i32>} : memref<1x8x16xf32, #tpu.memory_space<vmem>>, vector<1x8x16xf32>,
    return
  }
  func.func @transform_0(%arg0: i32) -> (i32, i32, i32) {
    %c0_i32 = arith.constant 0 : i32
    %c0_i32_0 = arith.constant 0 : i32
    %c0_i32_1 = arith.constant 0 : i32
    return %arg0, %c0_i32, %c0_i32_0 : i32, i32, i32
  }
  func.func @transform_1(%arg0: i32) -> (i32, i32) {
    %c0_i32 = arith.constant 0 : i32
    %c0_i32_0 = arith.constant 0 : i32
    %c0_i32_1 = arith.constant 0 : i32
    return %c0_i32, %c0_i32_0 : i32, i32
  }
  func.func @transform_2(%arg0: i32) -> (i32, i32) {
    %c0_i32 = arith.constant 0 : i32
    %c0_i32_0 = arith.constant 0 : i32
    %c0_i32_1 = arith.constant 0 : i32
    return %c0_i32, %c0_i32_0 : i32, i32
  }
  func.func @transform_3(%arg0: i32) -> (i32, i32) {
    %c0_i32 = arith.constant 0 : i32
    %c0_i32_0 = arith.constant 0 : i32
    %c0_i32_1 = arith.constant 0 : i32
    return %c0_i32, %c0_i32_0 : i32, i32
  }
  func.func @transform_4(%arg0: i32) -> (i32, i32) {
    %c0_i32 = arith.constant 0 : i32
    %c0_i32_0 = arith.constant 0 : i32
    %c0_i32_1 = arith.constant 0 : i32
    return %c0_i32, %c0_i32_0 : i32, i32
  }
  func.func @transform_5(%arg0: i32) -> (i32, i32, i32) {
    %c0_i32 = arith.constant 0 : i32
    %c0_i32_0 = arith.constant 0 : i32
    %c0_i32_1 = arith.constant 0 : i32
    return %arg0, %c0_i32, %c0_i32_0 : i32, i32, i32
  }
}

</mosaic_0001>

<llo_original>
// kernel: tpu_custom_call.1
$region0: #{tpu_custom_call.1}
  #allocation0 [shape = 'u32[]', space=smem, size = 0x4, offset = 0x4, fixed_abs, tag = 'smem constant byte address 0x4 - core index']
  #allocation1 [shape = 'u32[72,128]{1,0:T(1,128)}', space=vmem, size = 0x9000, scoped, tag = 'internal scratch']
  #allocation2 [shape = 'f32[1,4,18]{2,1,0:T(4,128)}', space=vmem, size = 0x800, scoped, tag = 'scratch operand']
  #allocation3 [shape = 'f32[1,4,16]{2,1,0:T(4,128)}', space=vmem, size = 0x800, scoped, tag = 'scratch operand']
  %s0 = inlined_call_operand.vmem [shape: f32[2,4,16], index: 0, kind: input, shape index: {}]
  %s1 = inlined_call_operand.vmem [shape: f32[4,3], index: 1, kind: input, shape index: {}]
  %s2 = inlined_call_operand.vmem [shape: f32[4,1], index: 2, kind: input, shape index: {}]
  %s3 = inlined_call_operand.vmem [shape: f32[8,4], index: 3, kind: input, shape index: {}]
  %s4 = inlined_call_operand.vmem [shape: f32[8,1], index: 4, kind: input, shape index: {}]
  %s5 = inlined_call_operand.hbm [shape: f32[2,8,16], index: 5, kind: output, shape index: {}]
  %s6 = sld [smem:[#allocation0]]
  $region53: #{tpu_custom_call.1} parent=0
    _
  %s8 = ssub.s32 1, %s6
  %s9 = scalar_select 0, %s8, %s6
  $region1: #{tpu_custom_call.1} parent=0
    #allocation4 [shape = 'u8[8192]{0}', space=vmem, size = 0x2000, scoped, tag = 'output window, operand 0']
    #allocation5 [shape = 's32[2]{0}', space=sflag, size = 0x8, scoped, tag = 'scoped memory for tpu_custom_call.1']
    %10 = vsyncpa [#allocation5], 0
    %s11 = scalar_lea.sflag [#allocation5], 1
    %12 = vsyncpa %s11, 0
    loop: start=0, step=1, limit=4
    $region2: #{tpu_custom_call.1} parent=1 // loop_pre_header
      _
    $region3: #{tpu_custom_call.1} parent=1 // loop_header
      %s14 = sphi 0, %s18
      %p15 = scmp.ge.s32.totalorder %s14, 4
      %s24 = sphi 0, %s26
      %s27 = sphi 0, %s24
      %s28 = sphi 0, %s27
      %s44 = sphi 0, %s28
      %s48 = sphi 0, %s48
      %s50 = sphi 0, %s48
      %s51 = sphi 0, %s50
      %s65 = sphi 0, %s51
      %s69 = sphi 0, %s69
      %s71 = sphi 0, %s69
      %s72 = sphi 0, %s71
      %s86 = sphi 0, %s72
      %s90 = sphi 0, %s90
      %s92 = sphi 0, %s90
      %s93 = sphi 0, %s92
      %s107 = sphi 0, %s93
      %s111 = sphi 0, %s111
      %s113 = sphi 0, %s111
      %s114 = sphi 0, %s113
      %s128 = sphi 0, %s114
      %s134 = sphi 0, %s136
      %s137 = sphi 0, %s134
      %s138 = sphi 0, %s137
      %s154 = sphi 0, %s138
    $region4: #{tpu_custom_call.1} parent=1 // loop_header_branch
      %17 = sbr.rel (%p15) target = $region8
    $region5: #{tpu_custom_call.1} parent=1 // loop_body
      %s19 = ssub.s32 %s14, 1
      %s20 = ssub.s32 %s14, 2
      %s21 = sadd.s32 %s14, 1
      %s22 = ssub.s32 %s14, %s21
      %p23 = scmp.eq.s32.totalorder %s22, 0
      %s25 = sadd.s32 %s24, 1
      %s26 = scalar_select %p23, %s24, %s25
      %p29 = pneg %p23
      %p30 = scmp.eq.s32.totalorder %s14, 1
      %p31 = por %p29, %p30
      %p32 = scmp.ne.s32.totalorder %s24, %s27
      %p33 = scmp.eq.s32.totalorder %s14, 0
      %p34 = por %p32, %p33
      %p35 = scmp.ne.s32.totalorder %s24, %s27
      %p36 = scmp.eq.s32.totalorder %s19, 1
      %p37 = por %p35, %p36
      %p38 = scmp.ne.s32.totalorder %s27, %s28
      %p39 = scmp.eq.s32.totalorder %s19, 0
      %p40 = por %p38, %p39
      %p41 = scmp.ne.s32.totalorder %s27, %s28
      %p42 = scmp.eq.s32.totalorder %s20, 1
      %p43 = por %p41, %p42
      %p45 = scmp.ne.s32.totalorder %s28, %s44
      %p46 = scmp.eq.s32.totalorder %s20, 0
      %p47 = por %p45, %p46
      %s49 = sadd.s32 %s48, 1
      %p52 = scmp.eq.s32.totalorder %s14, 1
      %p53 = scmp.ne.s32.totalorder %s48, %s50
      %p54 = scmp.eq.s32.totalorder %s14, 0
      %p55 = por %p53, %p54
      %p56 = scmp.ne.s32.totalorder %s48, %s50
      %p57 = scmp.eq.s32.totalorder %s19, 1
      %p58 = por %p56, %p57
      %p59 = scmp.ne.s32.totalorder %s50, %s51
      %p60 = scmp.eq.s32.totalorder %s19, 0
      %p61 = por %p59, %p60
      %p62 = scmp.ne.s32.totalorder %s50, %s51
      %p63 = scmp.eq.s32.totalorder %s20, 1
      %p64 = por %p62, %p63
      %p66 = scmp.ne.s32.totalorder %s51, %s65
      %p67 = scmp.eq.s32.totalorder %s20, 0
      %p68 = por %p66, %p67
      %s70 = sadd.s32 %s69, 1
      %p73 = scmp.eq.s32.totalorder %s14, 1
      %p74 = scmp.ne.s32.totalorder %s69, %s71
      %p75 = scmp.eq.s32.totalorder %s14, 0
      %p76 = por %p74, %p75
      %p77 = scmp.ne.s32.totalorder %s69, %s71
      %p78 = scmp.eq.s32.totalorder %s19, 1
      %p79 = por %p77, %p78
      %p80 = scmp.ne.s32.totalorder %s71, %s72
      %p81 = scmp.eq.s32.totalorder %s19, 0
      %p82 = por %p80, %p81
      %p83 = scmp.ne.s32.totalorder %s71, %s72
      %p84 = scmp.eq.s32.totalorder %s20, 1
      %p85 = por %p83, %p84
      %p87 = scmp.ne.s32.totalorder %s72, %s86
      %p88 = scmp.eq.s32.totalorder %s20, 0
      %p89 = por %p87, %p88
      %s91 = sadd.s32 %s90, 1
      %p94 = scmp.eq.s32.totalorder %s14, 1
      %p95 = scmp.ne.s32.totalorder %s90, %s92
      %p96 = scmp.eq.s32.totalorder %s14, 0
      %p97 = por %p95, %p96
      %p98 = scmp.ne.s32.totalorder %s90, %s92
      %p99 = scmp.eq.s32.totalorder %s19, 1
      %p100 = por %p98, %p99
      %p101 = scmp.ne.s32.totalorder %s92, %s93
      %p102 = scmp.eq.s32.totalorder %s19, 0
      %p103 = por %p101, %p102
      %p104 = scmp.ne.s32.totalorder %s92, %s93
      %p105 = scmp.eq.s32.totalorder %s20, 1
      %p106 = por %p104, %p105
      %p108 = scmp.ne.s32.totalorder %s93, %s107
      %p109 = scmp.eq.s32.totalorder %s20, 0
      %p110 = por %p108, %p109
      %s112 = sadd.s32 %s111, 1
      %p115 = scmp.eq.s32.totalorder %s14, 1
      %p116 = scmp.ne.s32.totalorder %s111, %s113
      %p117 = scmp.eq.s32.totalorder %s14, 0
      %p118 = por %p116, %p117
      %p119 = scmp.ne.s32.totalorder %s111, %s113
      %p120 = scmp.eq.s32.totalorder %s19, 1
      %p121 = por %p119, %p120
      %p122 = scmp.ne.s32.totalorder %s113, %s114
      %p123 = scmp.eq.s32.totalorder %s19, 0
      %p124 = por %p122, %p123
      %p125 = scmp.ne.s32.totalorder %s113, %s114
      %p126 = scmp.eq.s32.totalorder %s20, 1
      %p127 = por %p125, %p126
      %p129 = scmp.ne.s32.totalorder %s114, %s128
      %p130 = scmp.eq.s32.totalorder %s20, 0
      %p131 = por %p129, %p130
      %s132 = ssub.s32 %s14, %s21
      %p133 = scmp.eq.s32.totalorder %s132, 0
      %s135 = sadd.s32 %s134, 1
      %s136 = scalar_select %p133, %s134, %s135
      %p139 = pneg %p133
      %p140 = scmp.eq.s32.totalorder %s14, 1
      %p141 = por %p139, %p140
      %p142 = scmp.ne.s32.totalorder %s134, %s137
      %p143 = scmp.eq.s32.totalorder %s14, 0
      %p144 = por %p142, %p143
      %p145 = scmp.ne.s32.totalorder %s134, %s137
      %p146 = scmp.eq.s32.totalorder %s19, 1
      %p147 = por %p145, %p146
      %p148 = scmp.ne.s32.totalorder %s137, %s138
      %p149 = scmp.eq.s32.totalorder %s19, 0
      %p150 = por %p148, %p149
      %p151 = scmp.ne.s32.totalorder %s137, %s138
      %p152 = scmp.eq.s32.totalorder %s20, 1
      %p153 = por %p151, %p152
      %p155 = scmp.ne.s32.totalorder %s138, %s154
      %p156 = scmp.eq.s32.totalorder %s20, 0
      %p157 = por %p155, %p156
      %p158 = scmp.le.s32.totalorder 1, %s14
      %p159 = scmp.lt.s32.totalorder %s14, 3
      %p160 = pnand %p158, %p159
      %p161 = pneg %p160
      // Predicated region
      $region9: #{tpu_custom_call.1} parent=5 // pred_check
        _
      $region10: #{tpu_custom_call.1} parent=5 // pred_check_branch
        %163 = sbr.rel (%p160) target = $region12
      $region11: #{tpu_custom_call.1} parent=5 // pred_region
        %s164 = ssub.s32 %s14, 1
        // Predicated region
        $region13: #{tpu_custom_call.1} parent=11 // pred_check
          %p165 = pneg %p61
        $region14: #{tpu_custom_call.1} parent=11 // pred_check_branch
          %167 = sbr.rel (%p165) target = $region16
        $region15: #{tpu_custom_call.1} parent=11 // pred_region
          _
        $region16: #{tpu_custom_call.1} parent=11 // pred_fallthru
          _
        // Predicated region
        $region17: #{tpu_custom_call.1} parent=11 // pred_check
          %p168 = pneg %p82
        $region18: #{tpu_custom_call.1} parent=11 // pred_check_branch
          %170 = sbr.rel (%p168) target = $region20
        $region19: #{tpu_custom_call.1} parent=11 // pred_region
          _
        $region20: #{tpu_custom_call.1} parent=11 // pred_fallthru
          _
        // Predicated region
        $region21: #{tpu_custom_call.1} parent=11 // pred_check
          %p171 = pneg %p103
        $region22: #{tpu_custom_call.1} parent=11 // pred_check_branch
          %173 = sbr.rel (%p171) target = $region24
        $region23: #{tpu_custom_call.1} parent=11 // pred_region
          _
        $region24: #{tpu_custom_call.1} parent=11 // pred_fallthru
          _
        // Predicated region
        $region25: #{tpu_custom_call.1} parent=11 // pred_check
          %p174 = pneg %p124
        $region26: #{tpu_custom_call.1} parent=11 // pred_check_branch
          %176 = sbr.rel (%p174) target = $region28
        $region27: #{tpu_custom_call.1} parent=11 // pred_region
          _
        $region28: #{tpu_custom_call.1} parent=11 // pred_fallthru
          _
      $region12: #{tpu_custom_call.1} parent=5 // pred_fallthru
        _
      %p177 = scmp.lt.s32.totalorder %s14, 2
      // Predicated region
      $region29: #{tpu_custom_call.1} parent=5 // pred_check
        %p178 = pneg %p177
      $region30: #{tpu_custom_call.1} parent=5 // pred_check_branch
        %180 = sbr.rel (%p178) target = $region32
      $region31: #{tpu_custom_call.1} parent=5 // pred_region
        // Predicated region
        $region33: #{tpu_custom_call.1} parent=31 // pred_check
          %p181 = pneg %p34
        $region34: #{tpu_custom_call.1} parent=31 // pred_check_branch
          %183 = sbr.rel (%p181) target = $region36
        $region35: #{tpu_custom_call.1} parent=31 // pred_region
          %p184 = scmp.lt.s32.totalorder %s14, 1
          %s185 = scalar_select %p184, %s14, 1
          %s186 = smul.addr %s185, 4
          %s187 = scalar_lea.vmem %s0, %s186
        $region36: #{tpu_custom_call.1} parent=31 // pred_fallthru
          _
      $region32: #{tpu_custom_call.1} parent=5 // pred_fallthru
        _
      %p188 = scmp.le.s32.totalorder 1, %s14
      %p189 = scmp.lt.s32.totalorder %s14, 3
      %p190 = pnand %p188, %p189
      %p191 = pneg %p190
      // Predicated region
      $region37: #{tpu_custom_call.1} parent=5 // pred_check
        _
      $region38: #{tpu_custom_call.1} parent=5 // pred_check_branch
        %193 = sbr.rel (%p190) target = $region40
      $region39: #{tpu_custom_call.1} parent=5 // pred_region
        %s194 = ssub.s32 %s14, 1
        %p195 = scmp.lt.s32.totalorder %s19, 1
        %s196 = scalar_select %p195, %s19, 1
        %s197 = smul.addr %s196, 4
        %s198 = scalar_lea.vmem %s0, %s197
        %p199 = pneg %p40
        %p200 = pneg %p37
        %p201 = pneg %p61
        %p202 = pneg %p58
        %p203 = pneg %p82
        %p204 = pneg %p79
        %p205 = pneg %p103
        %p206 = pneg %p100
        %p207 = pneg %p124
        %p208 = pneg %p121
        %p209 = pneg %p150
        %p210 = pneg %p147
        %s211 = sand.u32 %s137, 1
        %s212 = scalar_lea.sflag [#allocation5], %s211
        %s213 = sand.u32 %s137, 1
        %s214 = smul.addr %s213, 8
        %s215 = scalar_lea.vmem [#allocation4], %s214
        %p216 = scmp.lt.s32.totalorder %s19, 1
        %s217 = scalar_select %p216, %s19, 1
        %s218 = smul.addr %s217, 4
        %s219 = scalar_lea.vmem %s0, %s218
        %vm220 = vcmask 3072
        %221 = vst.msk [vmem:[#allocation2] sm:$0xf] %vm220, 0.0
        %vm222 = vcmask 142472
        %223 = vst.msk [vmem:[#allocation2] sm:$0xf] %vm222, 0.0
        %v224 = vld [vmem:[%s219] sm:$0xf]
        %226 = vrot.lane.b32.xlu0 %v224, 1
        %v227 = vpop.permute.xlu0 %226
        %vm229 = vcmask 134152
        %230 = vst.msk [vmem:[#allocation2] sm:$0xf] %vm229, %v227
        %v231 = vld [vmem:[%s1] sm:$0xf]
        %v232 = vld [vmem:[%s2] sm:$0xf]
        %v233 = vld [vmem:[#allocation2] sm:$0xf]
        %235 = vset.pattern.permute.xlu0 0
        %236 = vperm.xlu0 %235, %v231
        %v237 = vpop.permute.xlu0 %236
        %v239 = vmul.f32 %v233, %v237
        %240 = vset.pattern.permute.xlu0 1
        %241 = vperm.xlu0 %240, %v231
        %v242 = vpop.permute.xlu0 %241
        %v244 = vmul.f32 %v233, %v242
        %246 = vrot.lane.b32.xlu0 %v244, 127
        %v247 = vpop.permute.xlu0 %246
        %v249 = vadd.f32 %v239, %v247
        %250 = vset.pattern.permute.xlu0 2
        %251 = vperm.xlu0 %250, %v231
        %v252 = vpop.permute.xlu0 %251
        %v254 = vmul.f32 %v233, %v252
        %256 = vrot.lane.b32.xlu0 %v254, 126
        %v257 = vpop.permute.xlu0 %256
        %v259 = vadd.f32 %v249, %v257
        %261 = vset.pattern.permute.xlu0 0
        %262 = vperm.xlu0 %261, %v232
        %v263 = vpop.permute.xlu0 %262
        %v265 = vadd.f32 %v259, %v263
        %v266 = vmax.f32 %v265, 0.0
        %vm267 = vcmask 125952
        %268 = vst.msk [vmem:[#allocation3] sm:$0xf] %vm267, %v266
        %v269 = vld [vmem:[%s3] sm:$0xff]
        %v270 = vld [vmem:[%s4] sm:$0xff]
        %v271 = vld [vmem:[#allocation3] sm:$0xf]
        %273 = vset.pattern.permute.xlu0 0
        %274 = vperm.xlu0 %273, %v270
        %v275 = vpop.permute.xlu0 %274
        %vm277 = vcmask 31744
        %v279 = vsel %vm277, %v269, 0
        %vm281 = vcmask 1043456
        %v283 = vsel %vm281, %v271, 0
        %285 = vmatpush.msra.mxu0 0.0
        %286 = vmatpush.msra.mxu0 0.0
        %287 = vmatpush.msra.mxu0 0.0
        %288 = vmatpush.msra.mxu0 0.0
        %289 = vmatpush.msra.mxu0 0.0
        %290 = vmatpush.msra.mxu0 0.0
        %291 = vmatpush.msra.mxu0 0.0
        %292 = vmatpush.msra.mxu0 0.0
        %293 = vmatpush.msra.mxu0 0.0
        %294 = vmatpush.msra.mxu0 0.0
        %295 = vmatpush.msra.mxu0 0.0
        %296 = vmatpush.msra.mxu0 0.0
        %297 = vmatpush.msra.mxu0 0.0
        %298 = vmatpush.msra.mxu0 0.0
        %299 = vmatpush.msra.mxu0 0.0
        %300 = vmatpush.msra.mxu0 %v283
        %301 = vmatmul.f32.gmra.mxu0 %v279
        %v302 = vpop.f32.mrf.mxu0
        %v303 = vadd.f32 %v275, %v302
        %304 = vdwg.mxu0
        %v305 = vmax.f32 %v303, 0.0
        %vm306 = vcmask 130048
        %307 = vst.msk [vmem:[%s215] sm:$0xff] %vm306, %v305
        %s308 = sand.u32 %s137, 1
        %s309 = scalar_lea.sflag [#allocation5], %s308
        %s310 = sand.u32 %s137, 1
        %s311 = smul.addr %s310, 8
        %s312 = scalar_lea.vmem [#allocation4], %s311
        // Predicated region
        $region41: #{tpu_custom_call.1} parent=39 // pred_check
          %p313 = pneg %p147
        $region42: #{tpu_custom_call.1} parent=39 // pred_check_branch
          %315 = sbr.rel (%p313) target = $region44
        $region43: #{tpu_custom_call.1} parent=39 // pred_region
          %317 = vsyncadd %s309, 0
          %s318 = smul.addr %s19, 8
          %s319 = scalar_lea.hbm %s5, %s318
          %s321 = sshll.u32 %s312, 4
          %s322 = int_to_ptr.vmem [resolvable:$true] %s321
          %s323 = sshll.u32 %s319, 4
          %s324 = int_to_ptr.hbm [resolvable:$true] %s323
          %326 = dma.vmem_to_hbm [thread:$0]  %s322, 128, %s324, %s309
        $region44: #{tpu_custom_call.1} parent=39 // pred_fallthru
          _
      $region40: #{tpu_custom_call.1} parent=5 // pred_fallthru
        _
      %p327 = scmp.le.s32.totalorder 2, %s14
      // Predicated region
      $region45: #{tpu_custom_call.1} parent=5 // pred_check
        %p328 = pneg %p327
      $region46: #{tpu_custom_call.1} parent=5 // pred_check_branch
        %330 = sbr.rel (%p328) target = $region48
      $region47: #{tpu_custom_call.1} parent=5 // pred_region
        %s331 = ssub.s32 %s14, 2
        // Predicated region
        $region49: #{tpu_custom_call.1} parent=47 // pred_check
          %p332 = pneg %p153
        $region50: #{tpu_custom_call.1} parent=47 // pred_check_branch
          %334 = sbr.rel (%p332) target = $region52
        $region51: #{tpu_custom_call.1} parent=47 // pred_region
          %s335 = sand.u32 %s138, 1
          %s336 = scalar_lea.sflag [#allocation5], %s335
          %s337 = sand.u32 %s138, 1
          %s338 = smul.addr %s337, 8
          %s339 = scalar_lea.vmem [#allocation4], %s338
          %341 = dma.done %s336, 128
        $region52: #{tpu_custom_call.1} parent=47 // pred_fallthru
          _
      $region48: #{tpu_custom_call.1} parent=5 // pred_fallthru
        _
    $region6: #{tpu_custom_call.1} parent=1 // loop_footer
      %s18 = sadd.s32 1, %s14
    $region7: #{tpu_custom_call.1} parent=1 // loop_footer_branch
      %13 = sbr.rel target = $region3
    $region8: #{tpu_custom_call.1} parent=1 // loop_exit
      _
    %342 = vsyncpa [#allocation5], 1
    %s343 = scalar_lea.sflag [#allocation5], 1
    %344 = vsyncpa %s343, 1

</llo_original>
